<compile_context>
chip_gen: v7x
topology: tpu7x:2x2x1
jax: 0.10.0
libtpu: 0.0.40
codegen_flags: <defaults>
</compile_context>

<pallas_src>
import math

import jax
import jax.numpy as jnp
from jax.experimental import pallas as pl
from jax.experimental.pallas import tpu as pltpu

# ---- hyper-parameters (small, consistent with the module's constraints) -------
B = 2            # batch size
T = 16           # tokens (#patches); T // window_size must equal 2 (window_reverse n=2)
D = 32           # d_model (== FeedForward hidden_dim in this module)
H = 2            # num_heads (attention params exist but their output is discarded)
W = 8            # window_size (even, as create_mask requires)
LN_EPS = 1e-5
BT = B * T       # batch folded into matmul rows: (BT, D) = (32, 32)
P_ROWS = 2 * D + 8   # param slab rows: w_f1' (D) + w_f2 (D) + 4 vec rows + 4 pad


# ------------------------------ in-kernel helpers ------------------------------
def _erf(x):
    # Abramowitz & Stegun 7.1.26 polynomial (|err| < 1.5e-7); uses only exp/mul/
    # add/where so it lowers cleanly in Mosaic (exp goes to the otherwise-idle EUP).
    a1, a2, a3, a4, a5 = 0.254829592, -0.284496736, 1.421413741, -1.453152027, 1.061405429
    p = 0.3275911
    sgn = jnp.where(x >= 0.0, 1.0, -1.0)
    ax = jnp.abs(x)
    t = 1.0 / (1.0 + p * ax)                       # exact divide: keeps precision margin
    poly = ((((a5 * t + a4) * t + a3) * t + a2) * t + a1) * t
    return sgn * (1.0 - poly * jnp.exp(-ax * ax))


def _gelu_exact(x):
    # torch.nn.GELU() default is the exact (erf-based) GELU, not the tanh approx.
    return 0.5 * x * (1.0 + _erf(x * (1.0 / math.sqrt(2.0))))


# --------------------------------- the kernel ----------------------------------
def swin_block_kernel(x_ref, p_ref, o_ref):
    # x_ref: (BT, D)      activations (batch folded into rows); aliased with output
    # p_ref: (P_ROWS, D)  pre-packed params:
    #   rows [0,   D)   : w_f1' = gamma2-scaled FFN1 weight
    #   rows [D,  2D)   : w_f2
    #   row  2D         : ln1_gamma
    #   row  2D + 1     : ln1_beta
    #   row  2D + 2     : b_f1' = b_f1 + beta2 @ w_f1
    #   row  2D + 3     : b_f2
    #   rows 2D+4..2D+7 : zero pad (sublane alignment)
    x = x_ref[...]                                      # (BT, D)
    w1 = p_ref[0:D, :]                                  # (D, D)
    w2 = p_ref[D:2 * D, :]                              # (D, D)
    ln1_g = p_ref[2 * D:2 * D + 1, :]                   # (1, D)
    ln1_b = p_ref[2 * D + 1:2 * D + 2, :]
    b1 = p_ref[2 * D + 2:2 * D + 3, :]
    b2 = p_ref[2 * D + 3:2 * D + 4, :]

    # ---------- attention block: Residual(PreNorm(MultiheadAttention)) ----------
    # Reference discards the attention values and returns its round-tripped input
    # (identity at T == 2*window_size), so this block is exactly LayerNorm(x) + x.
    mu = jnp.mean(x, axis=-1, keepdims=True)
    var = jnp.mean(jnp.square(x - mu), axis=-1, keepdims=True)
    x1 = (x - mu) * jax.lax.rsqrt(var + LN_EPS) * ln1_g + ln1_b + x

    # ---------------- mlp block: Residual(PreNorm(FeedForward)) -----------------
    # LN2 affine is folded into w1/b1 at pack time -> only the raw normalization here.
    mu2 = jnp.mean(x1, axis=-1, keepdims=True)
    var2 = jnp.mean(jnp.square(x1 - mu2), axis=-1, keepdims=True)
    xn = (x1 - mu2) * jax.lax.rsqrt(var2 + LN_EPS)
    hid = _gelu_exact(jnp.dot(xn, w1, preferred_element_type=jnp.float32) + b1)
    ffn = jnp.dot(hid, w2, preferred_element_type=jnp.float32) + b2
    o_ref[...] = (ffn + x1).astype(o_ref.dtype)


# --------------------------------- the wrapper ----------------------------------
def pack_params(params):
    """Pack all live parameters into one (P_ROWS, D) slab.  Run ONCE at init
    (off the hot path) so the per-call wrapper issues no concatenations.
    LN2's affine is folded into the first FFN matmul (exact up to fp reassoc)."""
    w_f1p = params["ln2_g"].reshape(D, 1) * params["w_f1"]          # row-scale by gamma2
    b_f1p = params["b_f1"] + params["ln2_b"] @ params["w_f1"]       # beta2 folded into bias
    return jnp.concatenate(
        [w_f1p, params["w_f2"],
         params["ln1_g"], params["ln1_b"], b_f1p, params["b_f2"],
         jnp.zeros((P_ROWS - (2 * D + 4), D), jnp.float32)], axis=0)  # (P_ROWS, D)


def swin_transformer_block(x, param_slab):
    x2d = x.reshape(BT, D)                                # contiguous reshape: free
    out2d = pl.pallas_call(
        swin_block_kernel,
        out_shape=jax.ShapeDtypeStruct((BT, D), jnp.float32),
        # No grid: whole-array VMEM blocks -> no dead double buffers, no
        # pipeline prologue/epilogue for a single-step problem.
        in_specs=[pl.BlockSpec(memory_space=pltpu.MemorySpace.VMEM),
                  pl.BlockSpec(memory_space=pltpu.MemorySpace.VMEM)],
        out_specs=pl.BlockSpec(memory_space=pltpu.MemorySpace.VMEM),
        input_output_aliases={0: 0},                      # write result in place of x2d
    )(x2d, param_slab)
    return out2d.reshape(B, T, D)


swin_block = jax.jit(swin_transformer_block)


# ------------------------- deterministic parameter init -------------------------
def init_params(key):
    ks = jax.random.split(key, 10)

    def linear(k, fan_in, fan_out):
        # weights stored as (in, out) and applied as x @ W (== PyTorch's x @ W.T)
        kw, kb = jax.random.split(k)
        bound = 1.0 / math.sqrt(fan_in)
        w = jax.random.uniform(kw, (fan_in, fan_out), jnp.float32, -bound, bound)
        b = jax.random.uniform(kb, (1, fan_out), jnp.float32, -bound, bound)
        return w, b

    # Attention-path parameters exist in the module but their computed values are
    # discarded by the reference forward(), so they do not enter the kernel.
    w_qkv, b_qkv = linear(ks[0], D, 3 * D)     # nn.Linear(d_model, 3*d_model) (output unused)
    w_o, b_o = linear(ks[1], D, D)             # nn.Linear(d_model, d_model)   (output unused)
    w_f1, b_f1 = linear(ks[2], D, D)           # FeedForward hidden_dim = d_model
    w_f2, b_f2 = linear(ks[3], D, D)
    return dict(
        ln1_g=1.0 + 0.1 * jax.random.normal(ks[4], (1, D), jnp.float32),
        ln1_b=0.1 * jax.random.normal(ks[5], (1, D), jnp.float32),
        ln2_g=1.0 + 0.1 * jax.random.normal(ks[6], (1, D), jnp.float32),
        ln2_b=0.1 * jax.random.normal(ks[7], (1, D), jnp.float32),
        w_qkv=w_qkv, b_qkv=b_qkv, w_o=w_o, b_o=b_o,
        w_f1=w_f1, b_f1=b_f1, w_f2=w_f2, b_f2=b_f2,
    )


# ------------------------------ pure-JAX reference ------------------------------
def reference_forward(x, params):
    # Uses the ORIGINAL (unpacked, unfolded) parameters, independently checking
    # both the attention-block identity and the LN2-affine folding.
    def ln(z, g, b):
        mu = jnp.mean(z, axis=-1, keepdims=True)
        var = jnp.mean(jnp.square(z - mu), axis=-1, keepdims=True)
        return (z - mu) / jnp.sqrt(var + LN_EPS) * g + b

    # attention block == LayerNorm(x) + x (attention values discarded by reference)
    x1 = ln(x, params["ln1_g"], params["ln1_b"]) + x
    h = ln(x1, params["ln2_g"], params["ln2_b"])
    h = jax.nn.gelu(h @ params["w_f1"] + params["b_f1"], approximate=False)
    h = h @ params["w_f2"] + params["b_f2"]
    return h + x1


# ------------------------------------ main ---------------------------------------
if __name__ == "__main__":
    key = jax.random.PRNGKey(0)
    kx, kp = jax.random.split(key)
    x = jax.random.normal(kx, (B, T, D), jnp.float32)
    params = init_params(kp)
    param_slab = pack_params(params)          # packed once, off the hot path

    out = swin_block(x, param_slab)
    jax.block_until_ready(out)

    ref = reference_forward(x, params)
    assert out.shape == (B, T, D), out.shape
    max_err = float(jnp.max(jnp.abs(out - ref)))
    assert max_err < 1e-3, f"max abs err = {max_err}"
    print("KERNEL_OK")
</pallas_src>

<mosaic_0001>
module attributes {stable_mosaic.version = 11 : i64} {
  func.func @swin_block_kernel(%arg0: memref<32x32xf32, #tpu.memory_space<vmem>>, %arg1: memref<72x32xf32, #tpu.memory_space<vmem>>, %arg2: memref<32x32xf32, #tpu.memory_space<vmem>>) attributes {dimension_semantics = [], scalar_prefetch = 0 : i64, scratch_operands = 0 : i64, tpu.core_type = #tpu.core_type<tc>} {
    %c0 = arith.constant 0 : index
    %c0_0 = arith.constant 0 : index
    %0 = vector.load %arg0[%c0, %c0_0] : memref<32x32xf32, #tpu.memory_space<vmem>>, vector<32x32xf32>
    %c0_1 = arith.constant 0 : index
    %c0_2 = arith.constant 0 : index
    %1 = vector.load %arg1[%c0_1, %c0_2] : memref<72x32xf32, #tpu.memory_space<vmem>>, vector<32x32xf32>
    %c32 = arith.constant 32 : index
    %c0_3 = arith.constant 0 : index
    %2 = vector.load %arg1[%c32, %c0_3] : memref<72x32xf32, #tpu.memory_space<vmem>>, vector<32x32xf32>
    %c64 = arith.constant 64 : index
    %c0_4 = arith.constant 0 : index
    %3 = vector.load %arg1[%c64, %c0_4] : memref<72x32xf32, #tpu.memory_space<vmem>>, vector<1x32xf32>
    %c65 = arith.constant 65 : index
    %c0_5 = arith.constant 0 : index
    %4 = vector.load %arg1[%c65, %c0_5] : memref<72x32xf32, #tpu.memory_space<vmem>>, vector<1x32xf32>
    %c66 = arith.constant 66 : index
    %c0_6 = arith.constant 0 : index
    %5 = vector.load %arg1[%c66, %c0_6] : memref<72x32xf32, #tpu.memory_space<vmem>>, vector<1x32xf32>
    %c67 = arith.constant 67 : index
    %c0_7 = arith.constant 0 : index
    %6 = vector.load %arg1[%c67, %c0_7] : memref<72x32xf32, #tpu.memory_space<vmem>>, vector<1x32xf32>
    %cst = arith.constant dense<0.000000e+00> : vector<32xf32>
    %7 = vector.multi_reduction <add>, %0, %cst [1] : vector<32x32xf32> to vector<32xf32>
    %8 = vector.shape_cast %7 : vector<32xf32> to vector<32x1xf32>
    %cst_8 = arith.constant 3.200000e+01 : f32
    %9 = vector.broadcast %cst_8 : f32 to vector<32x1xf32>
    %10 = arith.divf %8, %9 : vector<32x1xf32>
    %11 = vector.broadcast %10 : vector<32x1xf32> to vector<32x32xf32>
    %12 = arith.subf %0, %11 : vector<32x32xf32>
    %13 = arith.mulf %12, %12 : vector<32x32xf32>
    %cst_9 = arith.constant dense<0.000000e+00> : vector<32xf32>
    %14 = vector.multi_reduction <add>, %13, %cst_9 [1] : vector<32x32xf32> to vector<32xf32>
    %15 = vector.shape_cast %14 : vector<32xf32> to vector<32x1xf32>
    %cst_10 = arith.constant 3.200000e+01 : f32
    %16 = vector.broadcast %cst_10 : f32 to vector<32x1xf32>
    %17 = arith.divf %15, %16 : vector<32x1xf32>
    %18 = vector.broadcast %10 : vector<32x1xf32> to vector<32x32xf32>
    %19 = arith.subf %0, %18 : vector<32x32xf32>
    %cst_11 = arith.constant 9.99999974E-6 : f32
    %20 = vector.broadcast %cst_11 : f32 to vector<32x1xf32>
    %21 = arith.addf %17, %20 : vector<32x1xf32>
    %22 = math.rsqrt %21 : vector<32x1xf32>
    %23 = vector.broadcast %22 : vector<32x1xf32> to vector<32x32xf32>
    %24 = arith.mulf %19, %23 : vector<32x32xf32>
    %25 = vector.broadcast %3 : vector<1x32xf32> to vector<32x32xf32>
    %26 = arith.mulf %24, %25 : vector<32x32xf32>
    %27 = vector.broadcast %4 : vector<1x32xf32> to vector<32x32xf32>
    %28 = arith.addf %26, %27 : vector<32x32xf32>
    %29 = arith.addf %28, %0 : vector<32x32xf32>
    %cst_12 = arith.constant dense<0.000000e+00> : vector<32xf32>
    %30 = vector.multi_reduction <add>, %29, %cst_12 [1] : vector<32x32xf32> to vector<32xf32>
    %31 = vector.shape_cast %30 : vector<32xf32> to vector<32x1xf32>
    %cst_13 = arith.constant 3.200000e+01 : f32
    %32 = vector.broadcast %cst_13 : f32 to vector<32x1xf32>
    %33 = arith.divf %31, %32 : vector<32x1xf32>
    %34 = vector.broadcast %33 : vector<32x1xf32> to vector<32x32xf32>
    %35 = arith.subf %29, %34 : vector<32x32xf32>
    %36 = arith.mulf %35, %35 : vector<32x32xf32>
    %cst_14 = arith.constant dense<0.000000e+00> : vector<32xf32>
    %37 = vector.multi_reduction <add>, %36, %cst_14 [1] : vector<32x32xf32> to vector<32xf32>
    %38 = vector.shape_cast %37 : vector<32xf32> to vector<32x1xf32>
    %cst_15 = arith.constant 3.200000e+01 : f32
    %39 = vector.broadcast %cst_15 : f32 to vector<32x1xf32>
    %40 = arith.divf %38, %39 : vector<32x1xf32>
    %41 = vector.broadcast %33 : vector<32x1xf32> to vector<32x32xf32>
    %42 = arith.subf %29, %41 : vector<32x32xf32>
    %cst_16 = arith.constant 9.99999974E-6 : f32
    %43 = vector.broadcast %cst_16 : f32 to vector<32x1xf32>
    %44 = arith.addf %40, %43 : vector<32x1xf32>
    %45 = math.rsqrt %44 : vector<32x1xf32>
    %46 = vector.broadcast %45 : vector<32x1xf32> to vector<32x32xf32>
    %47 = arith.mulf %42, %46 : vector<32x32xf32>
    %cst_17 = arith.constant dense<0.000000e+00> : vector<32x32xf32>
    %48 = tpu.matmul %47, %1, %cst_17 {dimension_numbers = #tpu.dot_dimension_numbers<[1], [0], [0], [1], [0, 0, 1, 1], [], []>} : vector<32x32xf32>, vector<32x32xf32>, vector<32x32xf32> -> vector<32x32xf32>
    %49 = vector.broadcast %5 : vector<1x32xf32> to vector<32x32xf32>
    %50 = arith.addf %48, %49 : vector<32x32xf32>
    %cst_18 = arith.constant 5.000000e-01 : f32
    %51 = vector.broadcast %cst_18 : f32 to vector<32x32xf32>
    %52 = arith.mulf %51, %50 : vector<32x32xf32>
    %cst_19 = arith.constant 0.707106769 : f32
    %53 = vector.broadcast %cst_19 : f32 to vector<32x32xf32>
    %54 = arith.mulf %50, %53 : vector<32x32xf32>
    %cst_20 = arith.constant 0.000000e+00 : f32
    %55 = vector.broadcast %cst_20 : f32 to vector<32x32xf32>
    %56 = arith.cmpf oge, %54, %55 : vector<32x32xf32>
    %cst_21 = arith.constant 1.000000e+00 : f32
    %cst_22 = arith.constant -1.000000e+00 : f32
    %57 = vector.broadcast %cst_21 : f32 to vector<32x32xf32>
    %58 = vector.broadcast %cst_22 : f32 to vector<32x32xf32>
    %59 = arith.select %56, %57, %58 : vector<32x32xi1>, vector<32x32xf32>
    %60 = math.absf %54 : vector<32x32xf32>
    %cst_23 = arith.constant 0.327591091 : f32
    %61 = vector.broadcast %cst_23 : f32 to vector<32x32xf32>
    %62 = arith.mulf %61, %60 : vector<32x32xf32>
    %cst_24 = arith.constant 1.000000e+00 : f32
    %63 = vector.broadcast %cst_24 : f32 to vector<32x32xf32>
    %64 = arith.addf %63, %62 : vector<32x32xf32>
    %cst_25 = arith.constant 1.000000e+00 : f32
    %65 = vector.broadcast %cst_25 : f32 to vector<32x32xf32>
    %66 = arith.divf %65, %64 : vector<32x32xf32>
    %cst_26 = arith.constant 1.06140542 : f32
    %67 = vector.broadcast %cst_26 : f32 to vector<32x32xf32>
    %68 = arith.mulf %67, %66 : vector<32x32xf32>
    %cst_27 = arith.constant -1.45315206 : f32
    %69 = vector.broadcast %cst_27 : f32 to vector<32x32xf32>
    %70 = arith.addf %68, %69 : vector<32x32xf32>
    %71 = arith.mulf %70, %66 : vector<32x32xf32>
    %cst_28 = arith.constant 1.42141378 : f32
    %72 = vector.broadcast %cst_28 : f32 to vector<32x32xf32>
    %73 = arith.addf %71, %72 : vector<32x32xf32>
    %74 = arith.mulf %73, %66 : vector<32x32xf32>
    %cst_29 = arith.constant -0.284496725 : f32
    %75 = vector.broadcast %cst_29 : f32 to vector<32x32xf32>
    %76 = arith.addf %74, %75 : vector<32x32xf32>
    %77 = arith.mulf %76, %66 : vector<32x32xf32>
    %cst_30 = arith.constant 0.254829586 : f32
    %78 = vector.broadcast %cst_30 : f32 to vector<32x32xf32>
    %79 = arith.addf %77, %78 : vector<32x32xf32>
    %80 = arith.mulf %79, %66 : vector<32x32xf32>
    %cst_31 = arith.constant 0.000000e+00 : f32
    %81 = vector.broadcast %cst_31 : f32 to vector<32x32xf32>
    %82 = arith.subf %81, %60 : vector<32x32xf32>
    %83 = arith.mulf %82, %60 : vector<32x32xf32>
    %84 = math.exp %83 : vector<32x32xf32>
    %85 = arith.mulf %80, %84 : vector<32x32xf32>
    %cst_32 = arith.constant 1.000000e+00 : f32
    %86 = vector.broadcast %cst_32 : f32 to vector<32x32xf32>
    %87 = arith.subf %86, %85 : vector<32x32xf32>
    %88 = arith.mulf %59, %87 : vector<32x32xf32>
    %cst_33 = arith.constant 1.000000e+00 : f32
    %89 = vector.broadcast %cst_33 : f32 to vector<32x32xf32>
    %90 = arith.addf %89, %88 : vector<32x32xf32>
    %91 = arith.mulf %52, %90 : vector<32x32xf32>
    %cst_34 = arith.constant dense<0.000000e+00> : vector<32x32xf32>
    %92 = tpu.matmul %91, %2, %cst_34 {dimension_numbers = #tpu.dot_dimension_numbers<[1], [0], [0], [1], [0, 0, 1, 1], [], []>} : vector<32x32xf32>, vector<32x32xf32>, vector<32x32xf32> -> vector<32x32xf32>
    %93 = vector.broadcast %6 : vector<1x32xf32> to vector<32x32xf32>
    %94 = arith.addf %92, %93 : vector<32x32xf32>
    %95 = arith.addf %94, %29 : vector<32x32xf32>
    %c0_35 = arith.constant 0 : index
    %c0_36 = arith.constant 0 : index
    %96 = vector.load %arg2[%c0_35, %c0_36] : memref<32x32xf32, #tpu.memory_space<vmem>>, vector<32x32xf32>
    tpu.vector_store %arg2[%c0_35, %c0_36], %95 {strides = array<i32>} : memref<32x32xf32, #tpu.memory_space<vmem>>, vector<32x32xf32>,
    return
  }
}

</mosaic_0001>

<llo_original>
// kernel: swin_transformer_block.1
$region0: #{swin_transformer_block.1}
  #allocation0 [shape = 'u32[]', space=smem, size = 0x4, offset = 0x4, fixed_abs, tag = 'smem constant byte address 0x4 - core index']
  #allocation1 [shape = 'u32[144,128]{1,0:T(1,128)}', space=vmem, size = 0x12000, scoped, tag = 'internal scratch']
  %s0 = inlined_call_operand.vmem [shape: f32[32,32], index: 0, kind: input, shape index: {}, may-alias: {0,2}]
  %s1 = inlined_call_operand.vmem [shape: f32[72,32], index: 1, kind: input, shape index: {}]
  %s2 = inlined_call_operand.vmem [shape: f32[32,32], index: 2, kind: output, shape index: {}, may-alias: {0,2}]
  %s3 = sld [smem:[#allocation0]]
  $region18: #{swin_transformer_block.1} parent=0
    _
  %s5 = ssub.s32 1, %s3
  %s6 = scalar_select 0, %s5, %s3
  // Predicated region
  $region2: #{swin_transformer_block.1} parent=0 // pred_check
    _
  $region3: #{swin_transformer_block.1} parent=0 // pred_check_branch
    %8 = sbr.rel (0) target = $region5
  $region4: #{swin_transformer_block.1} parent=0 // pred_region
    _
  $region5: #{swin_transformer_block.1} parent=0 // pred_fallthru
    _
  // Predicated region
  $region6: #{swin_transformer_block.1} parent=0 // pred_check
    _
  $region7: #{swin_transformer_block.1} parent=0 // pred_check_branch
    %10 = sbr.rel (0) target = $region9
  $region8: #{swin_transformer_block.1} parent=0 // pred_region
    _
  $region9: #{swin_transformer_block.1} parent=0 // pred_fallthru
    _
  %v11 = vld [vmem:[%s0] sm:$0xff]
  %v12 = vld [vmem:[%s0 + $0x8] sm:$0xff]
  %v13 = vld [vmem:[%s0 + $0x10] sm:$0xff]
  %v14 = vld [vmem:[%s0 + $0x18] sm:$0xff]
  %v15 = vld [vmem:[%s1] sm:$0xff]
  %v16 = vld [vmem:[%s1 + $0x8] sm:$0xff]
  %v17 = vld [vmem:[%s1 + $0x10] sm:$0xff]
  %v18 = vld [vmem:[%s1 + $0x18] sm:$0xff]
  %v19 = vld [vmem:[%s1 + $0x20] sm:$0xff]
  %v20 = vld [vmem:[%s1 + $0x28] sm:$0xff]
  %v21 = vld [vmem:[%s1 + $0x30] sm:$0xff]
  %v22 = vld [vmem:[%s1 + $0x38] sm:$0xff]
  %v23 = vld [vmem:[%s1 + $0x40] sm:$0x1]
  %v24 = vld [vmem:[%s1 + $0x41] sm:$0x1]
  %v25 = vld [vmem:[%s1 + $0x42] sm:$0x1]
  %v26 = vld [vmem:[%s1 + $0x43] sm:$0x1]
  %vm27 = vcmask 261120
  %v28 = vsel %vm27, %v11, 0.0
  %29 = vadd.xlane.f32.xlu0 %v28
  %v30 = vpop.xlane.xlu0 %29
  %v31 = vsel %vm27, %v12, 0.0
  %32 = vadd.xlane.f32.xlu0 %v31
  %v33 = vpop.xlane.xlu0 %32
  %v34 = vsel %vm27, %v13, 0.0
  %35 = vadd.xlane.f32.xlu0 %v34
  %v36 = vpop.xlane.xlu0 %35
  %v37 = vsel %vm27, %v14, 0.0
  %38 = vadd.xlane.f32.xlu0 %v37
  %v39 = vpop.xlane.xlu0 %38
  %v40 = vrcp.pop 32.0
  %v41 = vmul.f32 %v30, %v40
  %v42 = vmul.f32 %v33, %v40
  %v43 = vmul.f32 %v36, %v40
  %v44 = vmul.f32 %v39, %v40
  %v45 = vsub.f32 %v11, %v41
  %v46 = vsub.f32 %v12, %v42
  %v47 = vsub.f32 %v13, %v43
  %v48 = vsub.f32 %v14, %v44
  %v49 = vmul.f32 %v45, %v45
  %v50 = vmul.f32 %v46, %v46
  %v51 = vmul.f32 %v47, %v47
  %v52 = vmul.f32 %v48, %v48
  %v53 = vsel %vm27, %v49, 0.0
  %54 = vadd.xlane.f32.xlu0 %v53
  %v55 = vpop.xlane.xlu0 %54
  %v56 = vsel %vm27, %v50, 0.0
  %57 = vadd.xlane.f32.xlu0 %v56
  %v58 = vpop.xlane.xlu0 %57
  %v59 = vsel %vm27, %v51, 0.0
  %60 = vadd.xlane.f32.xlu0 %v59
  %v61 = vpop.xlane.xlu0 %60
  %v62 = vsel %vm27, %v52, 0.0
  %63 = vadd.xlane.f32.xlu0 %v62
  %v64 = vpop.xlane.xlu0 %63
  %v65 = vmul.f32 %v55, %v40
  %v66 = vmul.f32 %v58, %v40
  %v67 = vmul.f32 %v61, %v40
  %v68 = vmul.f32 %v64, %v40
  %v69 = vadd.f32 %v65, 1e-05
  %v70 = vadd.f32 %v66, 1e-05
  %v71 = vadd.f32 %v67, 1e-05
  %v72 = vadd.f32 %v68, 1e-05
  %v73 = vrsqrt.pop %v69
  %v74 = vrsqrt.pop %v70
  %v75 = vrsqrt.pop %v71
  %v76 = vrsqrt.pop %v72
  %v77 = vmul.f32 %v45, %v73
  %v78 = vmul.f32 %v46, %v74
  %v79 = vmul.f32 %v47, %v75
  %v80 = vmul.f32 %v48, %v76
  %v81 = vlaneseq
  %v82 = vshrl.u32 %v81, 7
  %v83 = vsub.s32 0, %v82
  %v84 = vrot.slane %v23, %v83
  %v85 = vmul.f32 %v77, %v84
  %v86 = vmul.f32 %v78, %v84
  %v87 = vmul.f32 %v79, %v84
  %v88 = vmul.f32 %v80, %v84
  %v89 = vlaneseq
  %v90 = vshrl.u32 %v89, 7
  %v91 = vsub.s32 0, %v90
  %v92 = vrot.slane %v24, %v91
  %v93 = vadd.f32 %v85, %v92
  %v94 = vadd.f32 %v86, %v92
  %v95 = vadd.f32 %v87, %v92
  %v96 = vadd.f32 %v88, %v92
  %v97 = vadd.f32 %v93, %v11
  %v98 = vadd.f32 %v94, %v12
  %v99 = vadd.f32 %v95, %v13
  %v100 = vadd.f32 %v96, %v14
  %v101 = vsel %vm27, %v97, 0.0
  %102 = vadd.xlane.f32.xlu0 %v101
  %v103 = vpop.xlane.xlu0 %102
  %v104 = vsel %vm27, %v98, 0.0
  %105 = vadd.xlane.f32.xlu0 %v104
  %v106 = vpop.xlane.xlu0 %105
  %v107 = vsel %vm27, %v99, 0.0
  %108 = vadd.xlane.f32.xlu0 %v107
  %v109 = vpop.xlane.xlu0 %108
  %v110 = vsel %vm27, %v100, 0.0
  %111 = vadd.xlane.f32.xlu0 %v110
  %v112 = vpop.xlane.xlu0 %111
  %v113 = vmul.f32 %v103, %v40
  %v114 = vmul.f32 %v106, %v40
  %v115 = vmul.f32 %v109, %v40
  %v116 = vmul.f32 %v112, %v40
  %v117 = vsub.f32 %v97, %v113
  %v118 = vsub.f32 %v98, %v114
  %v119 = vsub.f32 %v99, %v115
  %v120 = vsub.f32 %v100, %v116
  %v121 = vmul.f32 %v117, %v117
  %v122 = vmul.f32 %v118, %v118
  %v123 = vmul.f32 %v119, %v119
  %v124 = vmul.f32 %v120, %v120
  %v125 = vsel %vm27, %v121, 0.0
  %126 = vadd.xlane.f32.xlu0 %v125
  %v127 = vpop.xlane.xlu0 %126
  %v128 = vsel %vm27, %v122, 0.0
  %129 = vadd.xlane.f32.xlu0 %v128
  %v130 = vpop.xlane.xlu0 %129
  %v131 = vsel %vm27, %v123, 0.0
  %132 = vadd.xlane.f32.xlu0 %v131
  %v133 = vpop.xlane.xlu0 %132
  %v134 = vsel %vm27, %v124, 0.0
  %135 = vadd.xlane.f32.xlu0 %v134
  %v136 = vpop.xlane.xlu0 %135
  %v137 = vmul.f32 %v127, %v40
  %v138 = vmul.f32 %v130, %v40
  %v139 = vmul.f32 %v133, %v40
  %v140 = vmul.f32 %v136, %v40
  %v141 = vadd.f32 %v137, 1e-05
  %v142 = vadd.f32 %v138, 1e-05
  %v143 = vadd.f32 %v139, 1e-05
  %v144 = vadd.f32 %v140, 1e-05
  %v145 = vrsqrt.pop %v141
  %v146 = vrsqrt.pop %v142
  %v147 = vrsqrt.pop %v143
  %v148 = vrsqrt.pop %v144
  %v149 = vmul.f32 %v117, %v145
  %v150 = vmul.f32 %v118, %v146
  %v151 = vmul.f32 %v119, %v147
  %v152 = vmul.f32 %v120, %v148
  %v153 = vlaneseq
  %v154 = vshrl.u32 %v153, 7
  %v155 = vsub.s32 0, %v154
  %v156 = vrot.slane %v25, %v155
  %v158 = vsel %vm27, %v149, 0
  %v161 = vsel %vm27, %v150, 0
  %v164 = vsel %vm27, %v151, 0
  %v167 = vsel %vm27, %v152, 0
  %169 = vmatprep.subr.mxu0 0.0
  %170 = vmatpush1.msra.mxu0 %v15
  %171 = vmatprep.subr.mxu0 0.0
  %172 = vmatpush1.msra.mxu0 %v16
  %173 = vmatprep.subr.mxu0 0.0
  %174 = vmatpush1.msra.mxu0 %v17
  %175 = vmatprep.subr.mxu0 0.0
  %176 = vmatpush1.msra.mxu0 %v18
  %177 = vmatprep.subr.mxu0 0.0
  %178 = vmatpush1.msra.mxu0 0.0
  %179 = vmatprep.subr.mxu0 0.0
  %180 = vmatpush1.msra.mxu0 0.0
  %181 = vmatprep.subr.mxu0 0.0
  %182 = vmatpush1.msra.mxu0 0.0
  %183 = vmatprep.subr.mxu0 0.0
  %184 = vmatpush1.msra.mxu0 0.0
  %185 = vmatprep.subr.mxu0 0.0
  %186 = vmatpush1.msra.mxu0 0.0
  %187 = vmatprep.subr.mxu0 0.0
  %188 = vmatpush1.msra.mxu0 0.0
  %189 = vmatprep.subr.mxu0 0.0
  %190 = vmatpush1.msra.mxu0 0.0
  %191 = vmatprep.subr.mxu0 0.0
  %192 = vmatpush1.msra.mxu0 0.0
  %193 = vmatprep.subr.mxu0 0.0
  %194 = vmatpush1.msra.mxu0 0.0
  %195 = vmatprep.subr.mxu0 0.0
  %196 = vmatpush1.msra.mxu0 0.0
  %197 = vmatprep.subr.mxu0 0.0
  %198 = vmatpush1.msra.mxu0 0.0
  %199 = vmatprep.subr.mxu0 0.0
  %200 = vmatpush1.msra.mxu0 0.0
  %201 = vmatprep.subr.mxu0 0.0
  %202 = vmatpush1.msra.mxu0 0.0
  %203 = vmatprep.subr.mxu0 0.0
  %204 = vmatpush1.msra.mxu0 0.0
  %205 = vmatprep.subr.mxu0 0.0
  %206 = vmatpush1.msra.mxu0 0.0
  %207 = vmatprep.subr.mxu0 0.0
  %208 = vmatpush1.msra.mxu0 0.0
  %209 = vmatprep.subr.mxu0 0.0
  %210 = vmatpush1.msra.mxu0 0.0
  %211 = vmatprep.subr.mxu0 0.0
  %212 = vmatpush1.msra.mxu0 0.0
  %213 = vmatprep.subr.mxu0 0.0
  %214 = vmatpush1.msra.mxu0 0.0
  %215 = vmatprep.subr.mxu0 0.0
  %216 = vmatpush1.msra.mxu0 0.0
  %217 = vmatprep.subr.mxu0 0.0
  %218 = vmatpush1.msra.mxu0 0.0
  %219 = vmatprep.subr.mxu0 0.0
  %220 = vmatpush1.msra.mxu0 0.0
  %221 = vmatprep.subr.mxu0 0.0
  %222 = vmatpush1.msra.mxu0 0.0
  %223 = vmatprep.subr.mxu0 0.0
  %224 = vmatpush1.msra.mxu0 0.0
  %225 = vmatprep.subr.mxu0 0.0
  %226 = vmatpush1.msra.mxu0 0.0
  %227 = vmatprep.subr.mxu0 0.0
  %228 = vmatpush1.msra.mxu0 0.0
  %229 = vmatprep.subr.mxu0 0.0
  %230 = vmatpush1.msra.mxu0 0.0
  %231 = vmatprep.subr.mxu0 0.0
  %232 = vmatpush1.msra.mxu0 0.0
  %233 = vmatprep.mubr.f32.mxu0 0.0
  %234 = vmatmul.mubr.f32.gmra.mrb[0].mxu0 %v158
  %v235 = vpop.f32.mrb[0].mxu0
  %v236 = vadd.f32 %v156, %v235
  %v237 = vpop.f32.mrb[0].mxu0
  %238 = vmatprep.mubr.f32.mxu0 0.0
  %239 = vmatmul.mubr.f32.gmra.mrb[0].mxu0 %v161
  %v240 = vpop.f32.mrb[0].mxu0
  %v241 = vadd.f32 %v156, %v240
  %v242 = vpop.f32.mrb[0].mxu0
  %243 = vmatprep.mubr.f32.mxu0 0.0
  %244 = vmatmul.mubr.f32.gmra.mrb[0].mxu0 %v164
  %v245 = vpop.f32.mrb[0].mxu0
  %v246 = vadd.f32 %v156, %v245
  %v247 = vpop.f32.mrb[0].mxu0
  %248 = vmatprep.mubr.f32.mxu0 0.0
  %249 = vmatmul.mubr.f32.gmra.mrb[0].mxu0 %v167
  %v250 = vpop.f32.mrb[0].mxu0
  %v251 = vadd.f32 %v156, %v250
  %v252 = vpop.f32.mrb[0].mxu0
  %253 = vdwg.mxu0
  %v254 = vmul.f32 %v236, 0.5
  %v255 = vmul.f32 %v241, 0.5
  %v256 = vmul.f32 %v246, 0.5
  %v257 = vmul.f32 %v251, 0.5
  %v258 = vmul.f32 %v236, 0.70710677
  %v259 = vmul.f32 %v241, 0.70710677
  %v260 = vmul.f32 %v246, 0.70710677
  %v261 = vmul.f32 %v251, 0.70710677
  %vm262 = vcmp.ge.f32.partialorder %v258, 0.0
  %vm263 = vcmp.ge.f32.partialorder %v259, 0.0
  %vm264 = vcmp.ge.f32.partialorder %v260, 0.0
  %vm265 = vcmp.ge.f32.partialorder %v261, 0.0
  %v266 = vsel %vm262, 1.0, -1.0
  %v267 = vsel %vm263, 1.0, -1.0
  %v268 = vsel %vm264, 1.0, -1.0
  %v269 = vsel %vm265, 1.0, -1.0
  %v270 = vand.u32 2147483647, %v258
  %v271 = vand.u32 2147483647, %v259
  %v272 = vand.u32 2147483647, %v260
  %v273 = vand.u32 2147483647, %v261
  %v274 = vmul.f32 %v270, 0.3275911
  %v275 = vmul.f32 %v271, 0.3275911
  %v276 = vmul.f32 %v272, 0.3275911
  %v277 = vmul.f32 %v273, 0.3275911
  %v278 = vadd.f32 %v274, 1.0
  %v279 = vadd.f32 %v275, 1.0
  %v280 = vadd.f32 %v276, 1.0
  %v281 = vadd.f32 %v277, 1.0
  %v282 = vrcp.pop %v278
  %v283 = vmul.f32 1.0, %v282
  %v284 = vrcp.pop %v279
  %v285 = vmul.f32 1.0, %v284
  %v286 = vrcp.pop %v280
  %v287 = vmul.f32 1.0, %v286
  %v288 = vrcp.pop %v281
  %v289 = vmul.f32 1.0, %v288
  %v290 = vmul.f32 %v283, 1.0614054
  %v291 = vmul.f32 %v285, 1.0614054
  %v292 = vmul.f32 %v287, 1.0614054
  %v293 = vmul.f32 %v289, 1.0614054
  %v294 = vadd.f32 %v290, -1.4531521
  %v295 = vadd.f32 %v291, -1.4531521
  %v296 = vadd.f32 %v292, -1.4531521
  %v297 = vadd.f32 %v293, -1.4531521
  %v298 = vmul.f32 %v294, %v283
  %v299 = vmul.f32 %v295, %v285
  %v300 = vmul.f32 %v296, %v287
  %v301 = vmul.f32 %v297, %v289
  %v302 = vadd.f32 %v298, 1.4214138
  %v303 = vadd.f32 %v299, 1.4214138
  %v304 = vadd.f32 %v300, 1.4214138
  %v305 = vadd.f32 %v301, 1.4214138
  %v306 = vmul.f32 %v302, %v283
  %v307 = vmul.f32 %v303, %v285
  %v308 = vmul.f32 %v304, %v287
  %v309 = vmul.f32 %v305, %v289
  %v310 = vadd.f32 %v306, -0.28449672
  %v311 = vadd.f32 %v307, -0.28449672
  %v312 = vadd.f32 %v308, -0.28449672
  %v313 = vadd.f32 %v309, -0.28449672
  %v314 = vmul.f32 %v310, %v283
  %v315 = vmul.f32 %v311, %v285
  %v316 = vmul.f32 %v312, %v287
  %v317 = vmul.f32 %v313, %v289
  %v318 = vadd.f32 %v314, 0.2548296
  %v319 = vadd.f32 %v315, 0.2548296
  %v320 = vadd.f32 %v316, 0.2548296
  %v321 = vadd.f32 %v317, 0.2548296
  %v322 = vmul.f32 %v318, %v283
  %v323 = vmul.f32 %v319, %v285
  %v324 = vmul.f32 %v320, %v287
  %v325 = vmul.f32 %v321, %v289
  %v326 = vsub.f32 0.0, %v270
  %v327 = vsub.f32 0.0, %v271
  %v328 = vsub.f32 0.0, %v272
  %v329 = vsub.f32 0.0, %v273
  %v330 = vmul.f32 %v326, %v270
  %v331 = vmul.f32 %v327, %v271
  %v332 = vmul.f32 %v328, %v272
  %v333 = vmul.f32 %v329, %v273
  %v334 = vmul.f32 %v330, 1.442695
  %v335 = vpow.pop %v334
  %v336 = vmul.f32 %v331, 1.442695
  %v337 = vpow.pop %v336
  %v338 = vmul.f32 %v332, 1.442695
  %v339 = vpow.pop %v338
  %v340 = vmul.f32 %v333, 1.442695
  %v341 = vpow.pop %v340
  %v342 = vmul.f32 %v322, %v335
  %v343 = vmul.f32 %v323, %v337
  %v344 = vmul.f32 %v324, %v339
  %v345 = vmul.f32 %v325, %v341
  %v346 = vsub.f32 1.0, %v342
  %v347 = vsub.f32 1.0, %v343
  %v348 = vsub.f32 1.0, %v344
  %v349 = vsub.f32 1.0, %v345
  %v350 = vmul.f32 %v266, %v346
  %v351 = vmul.f32 %v267, %v347
  %v352 = vmul.f32 %v268, %v348
  %v353 = vmul.f32 %v269, %v349
  %v354 = vadd.f32 %v350, 1.0
  %v355 = vadd.f32 %v351, 1.0
  %v356 = vadd.f32 %v352, 1.0
  %v357 = vadd.f32 %v353, 1.0
  %v358 = vmul.f32 %v254, %v354
  %v359 = vmul.f32 %v255, %v355
  %v360 = vmul.f32 %v256, %v356
  %v361 = vmul.f32 %v257, %v357
  %v362 = vlaneseq
  %v363 = vshrl.u32 %v362, 7
  %v364 = vsub.s32 0, %v363
  %v365 = vrot.slane %v26, %v364
  %v367 = vsel %vm27, %v358, 0
  %v370 = vsel %vm27, %v359, 0
  %v373 = vsel %vm27, %v360, 0
  %v376 = vsel %vm27, %v361, 0
  %378 = vmatprep.subr.mxu0 0.0
  %379 = vmatpush1.msra.mxu0 %v19
  %380 = vmatprep.subr.mxu0 0.0
  %381 = vmatpush1.msra.mxu0 %v20
  %382 = vmatprep.subr.mxu0 0.0
  %383 = vmatpush1.msra.mxu0 %v21
  %384 = vmatprep.subr.mxu0 0.0
  %385 = vmatpush1.msra.mxu0 %v22
  %386 = vmatprep.subr.mxu0 0.0
  %387 = vmatpush1.msra.mxu0 0.0
  %388 = vmatprep.subr.mxu0 0.0
  %389 = vmatpush1.msra.mxu0 0.0
  %390 = vmatprep.subr.mxu0 0.0
  %391 = vmatpush1.msra.mxu0 0.0
  %392 = vmatprep.subr.mxu0 0.0
  %393 = vmatpush1.msra.mxu0 0.0
  %394 = vmatprep.subr.mxu0 0.0
  %395 = vmatpush1.msra.mxu0 0.0
  %396 = vmatprep.subr.mxu0 0.0
  %397 = vmatpush1.msra.mxu0 0.0
  %398 = vmatprep.subr.mxu0 0.0
  %399 = vmatpush1.msra.mxu0 0.0
  %400 = vmatprep.subr.mxu0 0.0
  %401 = vmatpush1.msra.mxu0 0.0
  %402 = vmatprep.subr.mxu0 0.0
  %403 = vmatpush1.msra.mxu0 0.0
  %404 = vmatprep.subr.mxu0 0.0
  %405 = vmatpush1.msra.mxu0 0.0
  %406 = vmatprep.subr.mxu0 0.0
  %407 = vmatpush1.msra.mxu0 0.0
  %408 = vmatprep.subr.mxu0 0.0
  %409 = vmatpush1.msra.mxu0 0.0
  %410 = vmatprep.subr.mxu0 0.0
  %411 = vmatpush1.msra.mxu0 0.0
  %412 = vmatprep.subr.mxu0 0.0
  %413 = vmatpush1.msra.mxu0 0.0
  %414 = vmatprep.subr.mxu0 0.0
  %415 = vmatpush1.msra.mxu0 0.0
  %416 = vmatprep.subr.mxu0 0.0
  %417 = vmatpush1.msra.mxu0 0.0
  %418 = vmatprep.subr.mxu0 0.0
  %419 = vmatpush1.msra.mxu0 0.0
  %420 = vmatprep.subr.mxu0 0.0
  %421 = vmatpush1.msra.mxu0 0.0
  %422 = vmatprep.subr.mxu0 0.0
  %423 = vmatpush1.msra.mxu0 0.0
  %424 = vmatprep.subr.mxu0 0.0
  %425 = vmatpush1.msra.mxu0 0.0
  %426 = vmatprep.subr.mxu0 0.0
  %427 = vmatpush1.msra.mxu0 0.0
  %428 = vmatprep.subr.mxu0 0.0
  %429 = vmatpush1.msra.mxu0 0.0
  %430 = vmatprep.subr.mxu0 0.0
  %431 = vmatpush1.msra.mxu0 0.0
  %432 = vmatprep.subr.mxu0 0.0
  %433 = vmatpush1.msra.mxu0 0.0
  %434 = vmatprep.subr.mxu0 0.0
  %435 = vmatpush1.msra.mxu0 0.0
  %436 = vmatprep.subr.mxu0 0.0
  %437 = vmatpush1.msra.mxu0 0.0
  %438 = vmatprep.subr.mxu0 0.0
  %439 = vmatpush1.msra.mxu0 0.0
  %440 = vmatprep.subr.mxu0 0.0
  %441 = vmatpush1.msra.mxu0 0.0
  %442 = vmatprep.mubr.f32.mxu0 0.0
  %443 = vmatmul.mubr.f32.gmra.mrb[0].mxu0 %v367
  %v444 = vpop.f32.mrb[0].mxu0
  %v445 = vadd.f32 %v365, %v444
  %v446 = vpop.f32.mrb[0].mxu0
  %447 = vmatprep.mubr.f32.mxu0 0.0
  %448 = vmatmul.mubr.f32.gmra.mrb[0].mxu0 %v370
  %v449 = vpop.f32.mrb[0].mxu0
  %v450 = vadd.f32 %v365, %v449
  %v451 = vpop.f32.mrb[0].mxu0
  %452 = vmatprep.mubr.f32.mxu0 0.0
  %453 = vmatmul.mubr.f32.gmra.mrb[0].mxu0 %v373
  %v454 = vpop.f32.mrb[0].mxu0
  %v455 = vadd.f32 %v365, %v454
  %v456 = vpop.f32.mrb[0].mxu0
  %457 = vmatprep.mubr.f32.mxu0 0.0
  %458 = vmatmul.mubr.f32.gmra.mrb[0].mxu0 %v376
  %v459 = vpop.f32.mrb[0].mxu0
  %v460 = vadd.f32 %v365, %v459
  %v461 = vpop.f32.mrb[0].mxu0
  %462 = vdwg.mxu0
  %v463 = vadd.f32 %v445, %v97
  %v464 = vadd.f32 %v450, %v98
  %v465 = vadd.f32 %v455, %v99
  %v466 = vadd.f32 %v460, %v100
  %467 = vst.msk [vmem:[%s2] sm:$0xff] %vm27, %v463
  %468 = vst.msk [vmem:[%s2 + $0x8] sm:$0xff] %vm27, %v464
  %469 = vst.msk [vmem:[%s2 + $0x10] sm:$0xff] %vm27, %v465
  %470 = vst.msk [vmem:[%s2 + $0x18] sm:$0xff] %vm27, %v466
  // Predicated region
  $region10: #{swin_transformer_block.1} parent=0 // pred_check
    _
  $region11: #{swin_transformer_block.1} parent=0 // pred_check_branch
    %472 = sbr.rel (0) target = $region13
  $region12: #{swin_transformer_block.1} parent=0 // pred_region
    _
  $region13: #{swin_transformer_block.1} parent=0 // pred_fallthru
    _
  // Predicated region
  $region14: #{swin_transformer_block.1} parent=0 // pred_check
    _
  $region15: #{swin_transformer_block.1} parent=0 // pred_check_branch
    %474 = sbr.rel (0) target = $region17
  $region16: #{swin_transformer_block.1} parent=0 // pred_region
    _
  $region17: #{swin_transformer_block.1} parent=0 // pred_fallthru
    _

</llo_original>
